<compile_context>
chip_gen: v7x
topology: tpu7x:2x2x1
jax: 0.10.0
libtpu: 0.0.40
codegen_flags: <defaults>
</compile_context>

<pallas_src>
import functools

import jax
import jax.numpy as jnp
from jax.experimental import pallas as pl
from jax.experimental.pallas import tpu as pltpu


def _round_up(x, m):
    return ((x + m - 1) // m) * m


# ---------------------------------------------------------------------------
# Fused kernel: one batch tile per grid step.
#   seq_ref    : [TB, L_pad, H]   (bf16/f32)
#   pooled_ref : [TB, H]          (bf16/f32)
#   w_span_ref : [SC_pad, H]      (bf16/f32)
#   b_span_ref : [SC_pad, 1]      (f32)
#   w_act_ref  : [H, SO_pad]      (bf16/f32)
#   b_act_ref  : [1, SO_pad]      (f32)
#   state_ref  : [TB, SO_pad]     (f32 out)
#   span_ref   : [TB, SC_pad, L_pad] (f32 out, softmax over L)
# ---------------------------------------------------------------------------
def _decoder_kernel(seq_ref, pooled_ref, w_span_ref, b_span_ref,
                    w_act_ref, b_act_ref, state_ref, span_ref,
                    *, tb, l_true):
    # ---- state (action) scores for this batch tile ----
    state = jnp.dot(pooled_ref[...], w_act_ref[...],
                    preferred_element_type=jnp.float32)         # [TB, SO_pad]
    state_ref[...] = state + b_act_ref[...]                     # bias broadcasts over TB

    # ---- span scores + softmax over L (lane axis) ----
    sc_pad = w_span_ref.shape[0]
    l_pad = span_ref.shape[-1]
    w = w_span_ref[...]                                         # [SC_pad, H]
    bias = b_span_ref[...]                                      # [SC_pad, 1]

    if l_pad != l_true:                                         # hoisted; static branch
        col = jax.lax.broadcasted_iota(jnp.int32, (sc_pad, l_pad), 1)
        pad_mask = col >= l_true

    for bidx in range(tb):                                      # small static unroll
        # contract H directly: [SC_pad, H] x [L_pad, H] -> [SC_pad, L_pad]
        logits = jax.lax.dot_general(
            w, seq_ref[bidx],
            dimension_numbers=(((1,), (1,)), ((), ())),
            preferred_element_type=jnp.float32)
        logits = logits + bias
        if l_pad != l_true:
            logits = jnp.where(pad_mask, jnp.float32(-1e30), logits)
        m = jnp.max(logits, axis=-1, keepdims=True)
        e = jnp.exp(logits - m)
        s = jnp.sum(e, axis=-1, keepdims=True)
        span_ref[bidx] = e * pl.reciprocal(s, approx=True)


# ---------------------------------------------------------------------------
# Decoder wrapper: weight packing, padding to lane-dense sizes, batch tiling.
# ---------------------------------------------------------------------------
def decoder_forward(params, sequence_output, pooled_output,
                    *, compute_dtype=jnp.bfloat16):
    """
    sequence_output: [B, L, H]; pooled_output: [B, H]
    Returns (state_scores [B, n_slot, n_op], span_scores [B, n_slot, 2, L]).
    """
    # TODO(synk): nn.Dropout is treated as identity (inference / eval mode).
    n_slot, n_op, H = params["w_action"].shape
    B, L, _ = sequence_output.shape

    SO, SC = n_slot * n_op, n_slot * 2
    SO_pad = _round_up(SO, 128)           # lane-dense state output
    SC_pad = _round_up(SC, 8)             # sublane-aligned span rows
    L_pad = _round_up(L, 128)             # lane-dense span output

    # Pack per-slot Linear weights into single matmul operands (zero-padded).
    w_a = jnp.transpose(params["w_action"], (2, 0, 1)).reshape(H, SO)
    w_a = jnp.pad(w_a, ((0, 0), (0, SO_pad - SO))).astype(compute_dtype)
    b_a = jnp.pad(params["b_action"].reshape(1, SO),
                  ((0, 0), (0, SO_pad - SO))).astype(jnp.float32)
    w_s = jnp.pad(params["w_span"].reshape(SC, H),
                  ((0, SC_pad - SC), (0, 0))).astype(compute_dtype)
    b_s = jnp.pad(params["b_span"].reshape(SC, 1),
                  ((0, SC_pad - SC), (0, 0))).astype(jnp.float32)

    # Batch tile: biggest that fits a conservative VMEM budget (v7x-safe),
    # sublane-friendly, and >= 2 grid steps at realistic B (v7x megacore).
    itemsize = jnp.dtype(compute_dtype).itemsize
    per_batch_bytes = 2 * L_pad * H * itemsize           # double-buffered seq tile
    budget = 12 * 1024 * 1024
    tb_max = max(1, budget // per_batch_bytes)
    if B <= 8:
        TB = B
    else:
        TB = min(tb_max, _round_up(pl.cdiv(B, 2), 8))
        TB = max(8, (TB // 8) * 8)
    B_pad = _round_up(B, TB)
    grid = (B_pad // TB,)

    seq = jnp.pad(sequence_output.astype(compute_dtype),
                  ((0, B_pad - B), (0, L_pad - L), (0, 0)))
    pooled = jnp.pad(pooled_output.astype(compute_dtype),
                     ((0, B_pad - B), (0, 0)))

    kernel = functools.partial(_decoder_kernel, tb=TB, l_true=L)

    state_full, span_full = pl.pallas_call(
        kernel,
        out_shape=(jax.ShapeDtypeStruct((B_pad, SO_pad), jnp.float32),
                   jax.ShapeDtypeStruct((B_pad, SC_pad, L_pad), jnp.float32)),
        grid=grid,
        in_specs=[
            pl.BlockSpec((TB, L_pad, H), lambda i: (i, 0, 0)),   # seq (batch-tiled)
            pl.BlockSpec((TB, H), lambda i: (i, 0)),             # pooled (batch-tiled)
            pl.BlockSpec((SC_pad, H), lambda i: (0, 0)),         # span weights (resident)
            pl.BlockSpec((SC_pad, 1), lambda i: (0, 0)),         # span bias
            pl.BlockSpec((H, SO_pad), lambda i: (0, 0)),         # action weights (resident)
            pl.BlockSpec((1, SO_pad), lambda i: (0, 0)),         # action bias
        ],
        out_specs=(
            pl.BlockSpec((TB, SO_pad), lambda i: (i, 0)),
            pl.BlockSpec((TB, SC_pad, L_pad), lambda i: (i, 0, 0)),
        ),
        compiler_params=pltpu.CompilerParams(
            dimension_semantics=("parallel",),
            vmem_limit_bytes=32 * 1024 * 1024),
    )(seq, pooled, w_s, b_s, w_a, b_a)

    state_scores = state_full[:B, :SO].reshape(B, n_slot, n_op)
    span_scores = span_full[:B, :SC, :L].reshape(B, n_slot, 2, L)
    return state_scores, span_scores


# ---------------------------------------------------------------------------
# Parameter construction (matches nn.Linear shapes per slot)
# ---------------------------------------------------------------------------
def make_decoder_params(key, hidden_size, n_op, n_slot):
    bound = 1.0 / jnp.sqrt(hidden_size)
    keys = jax.random.split(key, 4)
    w_action = jax.random.uniform(keys[0], (n_slot, n_op, hidden_size),
                                  jnp.float32, -bound, bound)
    b_action = jax.random.uniform(keys[1], (n_slot, n_op),
                                  jnp.float32, -bound, bound)
    w_span = jax.random.uniform(keys[2], (n_slot, 2, hidden_size),
                                jnp.float32, -bound, bound)
    b_span = jax.random.uniform(keys[3], (n_slot, 2),
                                jnp.float32, -bound, bound)
    return dict(w_action=w_action, b_action=b_action,
                w_span=w_span, b_span=b_span)


# ---------------------------------------------------------------------------
# Pure-JAX reference (mimics the PyTorch loop / cat / transpose exactly)
# ---------------------------------------------------------------------------
def decoder_forward_ref(params, sequence_output, pooled_output):
    n_slot = params["w_action"].shape[0]
    state, span = [], []
    for s in range(n_slot):
        state.append(pooled_output @ params["w_action"][s].T + params["b_action"][s])
        span.append(sequence_output @ params["w_span"][s].T + params["b_span"][s])
    state_scores = jnp.transpose(jnp.stack(state, axis=0), (1, 0, 2))      # [B, n_slot, n_op]
    span_scores = jnp.swapaxes(jnp.stack(span, axis=0), -1, -2)            # [n_slot, B, 2, L]
    span_scores = jax.nn.softmax(span_scores, axis=-1)
    span_scores = jnp.swapaxes(span_scores, 0, 1)                          # [B, n_slot, 2, L]
    return state_scores, span_scores


if __name__ == "__main__":
    B, L, H = 2, 8, 32
    n_op, n_slot = 4, 3

    key = jax.random.PRNGKey(0)
    k_seq, k_pool, k_param = jax.random.split(key, 3)
    sequence_output = jax.random.normal(k_seq, (B, L, H), jnp.float32)
    pooled_output = jax.random.normal(k_pool, (B, H), jnp.float32)
    params = make_decoder_params(k_param, H, n_op, n_slot)

    ref_state, ref_span = decoder_forward_ref(params, sequence_output, pooled_output)

    # f32 compute path: tight check of the kernel plumbing.
    st_f32, sp_f32 = decoder_forward(params, sequence_output, pooled_output,
                                     compute_dtype=jnp.float32)
    st_f32 = jax.block_until_ready(st_f32)
    sp_f32 = jax.block_until_ready(sp_f32)
    assert st_f32.shape == (B, n_slot, n_op) and sp_f32.shape == (B, n_slot, 2, L)
    assert jnp.allclose(st_f32, ref_state, atol=1e-2, rtol=1e-2)
    assert jnp.allclose(sp_f32, ref_span, atol=1e-2, rtol=1e-2)

    # bf16 compute path (production configuration): relaxed tolerance.
    st_bf16, sp_bf16 = decoder_forward(params, sequence_output, pooled_output,
                                       compute_dtype=jnp.bfloat16)
    st_bf16 = jax.block_until_ready(st_bf16)
    sp_bf16 = jax.block_until_ready(sp_bf16)
    assert st_bf16.shape == (B, n_slot, n_op) and sp_bf16.shape == (B, n_slot, 2, L)
    assert jnp.allclose(st_bf16, ref_state, atol=3e-2, rtol=3e-2)
    assert jnp.allclose(sp_bf16, ref_span, atol=3e-2, rtol=3e-2)

    print("KERNEL_OK")
</pallas_src>

<mosaic_0001>
module attributes {stable_mosaic.version = 11 : i64} {
  func.func @_decoder_kernel(%arg0: i32, %arg1: memref<2x128x32xf32, #tpu.memory_space<vmem>>, %arg2: memref<2x32xf32, #tpu.memory_space<vmem>>, %arg3: memref<8x32xf32, #tpu.memory_space<vmem>>, %arg4: memref<8x1xf32, #tpu.memory_space<vmem>>, %arg5: memref<32x128xf32, #tpu.memory_space<vmem>>, %arg6: memref<1x128xf32, #tpu.memory_space<vmem>>, %arg7: memref<2x128xf32, #tpu.memory_space<vmem>>, %arg8: memref<2x8x128xf32, #tpu.memory_space<vmem>>) attributes {dimension_semantics = [#tpu.dimension_semantics<parallel>], iteration_bounds = array<i64: 1>, scalar_prefetch = 0 : i64, scratch_operands = 0 : i64, tpu.core_type = #tpu.core_type<tc>, window_params = [{transform_indices = @transform_0, window_bounds = array<i64: 2, 128, 32>}, {transform_indices = @transform_1, window_bounds = array<i64: 2, 32>}, {pipeline_mode = #tpu.pipeline_mode<synchronous>, transform_indices = @transform_2, window_bounds = array<i64: 8, 32>}, {pipeline_mode = #tpu.pipeline_mode<synchronous>, transform_indices = @transform_3, window_bounds = array<i64: 8, 1>}, {pipeline_mode = #tpu.pipeline_mode<synchronous>, transform_indices = @transform_4, window_bounds = array<i64: 32, 128>}, {pipeline_mode = #tpu.pipeline_mode<synchronous>, transform_indices = @transform_5, window_bounds = array<i64: 1, 128>}, {transform_indices = @transform_6, window_bounds = array<i64: 2, 128>}, {transform_indices = @transform_7, window_bounds = array<i64: 2, 8, 128>}]} {
    %c0 = arith.constant 0 : index
    %c0_0 = arith.constant 0 : index
    %0 = vector.load %arg2[%c0, %c0_0] : memref<2x32xf32, #tpu.memory_space<vmem>>, vector<2x32xf32>
    %c0_1 = arith.constant 0 : index
    %c0_2 = arith.constant 0 : index
    %1 = vector.load %arg5[%c0_1, %c0_2] : memref<32x128xf32, #tpu.memory_space<vmem>>, vector<32x128xf32>
    %cst = arith.constant dense<0.000000e+00> : vector<2x128xf32>
    %2 = tpu.matmul %0, %1, %cst {dimension_numbers = #tpu.dot_dimension_numbers<[1], [0], [0], [1], [0, 0, 1, 1], [], []>} : vector<2x32xf32>, vector<32x128xf32>, vector<2x128xf32> -> vector<2x128xf32>
    %c0_3 = arith.constant 0 : index
    %c0_4 = arith.constant 0 : index
    %3 = vector.load %arg6[%c0_3, %c0_4] : memref<1x128xf32, #tpu.memory_space<vmem>>, vector<1x128xf32>
    %4 = vector.broadcast %3 : vector<1x128xf32> to vector<2x128xf32>
    %5 = arith.addf %2, %4 : vector<2x128xf32>
    %c0_5 = arith.constant 0 : index
    %c0_6 = arith.constant 0 : index
    %6 = vector.load %arg7[%c0_5, %c0_6] : memref<2x128xf32, #tpu.memory_space<vmem>>, vector<2x128xf32>
    tpu.vector_store %arg7[%c0_5, %c0_6], %5 {strides = array<i32>} : memref<2x128xf32, #tpu.memory_space<vmem>>, vector<2x128xf32>,
    %c0_7 = arith.constant 0 : index
    %c0_8 = arith.constant 0 : index
    %7 = vector.load %arg3[%c0_7, %c0_8] : memref<8x32xf32, #tpu.memory_space<vmem>>, vector<8x32xf32>
    %c0_9 = arith.constant 0 : index
    %c0_10 = arith.constant 0 : index
    %8 = vector.load %arg4[%c0_9, %c0_10] : memref<8x1xf32, #tpu.memory_space<vmem>>, vector<8x1xf32>
    %9 = tpu.iota {dimensions = array<i32: 1>} : vector<8x128xi32>
    %c8_i32 = arith.constant 8 : i32
    %10 = vector.broadcast %c8_i32 : i32 to vector<8x128xi32>
    %11 = arith.cmpi sge, %9, %10 : vector<8x128xi32>
    %c0_11 = arith.constant 0 : index
    %c0_12 = arith.constant 0 : index
    %c0_13 = arith.constant 0 : index
    %12 = vector.load %arg1[%c0_11, %c0_12, %c0_13] : memref<2x128x32xf32, #tpu.memory_space<vmem>>, vector<1x128x32xf32>
    %13 = vector.shape_cast %12 : vector<1x128x32xf32> to vector<128x32xf32>
    %cst_14 = arith.constant dense<0.000000e+00> : vector<8x128xf32>
    %14 = tpu.matmul %7, %13, %cst_14 {dimension_numbers = #tpu.dot_dimension_numbers<[1], [1], [0], [0], [0, 0, 1, 0], [], []>} : vector<8x32xf32>, vector<128x32xf32>, vector<8x128xf32> -> vector<8x128xf32>
    %15 = vector.broadcast %8 : vector<8x1xf32> to vector<8x128xf32>
    %16 = arith.addf %14, %15 : vector<8x128xf32>
    %cst_15 = arith.constant -1.000000e+30 : f32
    %17 = vector.broadcast %cst_15 : f32 to vector<8x128xf32>
    %18 = arith.select %11, %17, %16 : vector<8x128xi1>, vector<8x128xf32>
    %cst_16 = arith.constant dense<0xFF800000> : vector<8xf32>
    %19 = vector.multi_reduction <maximumf>, %18, %cst_16 [1] : vector<8x128xf32> to vector<8xf32>
    %20 = vector.shape_cast %19 : vector<8xf32> to vector<8x1xf32>
    %21 = vector.broadcast %20 : vector<8x1xf32> to vector<8x128xf32>
    %22 = arith.subf %18, %21 : vector<8x128xf32>
    %23 = math.exp %22 : vector<8x128xf32>
    %cst_17 = arith.constant dense<0.000000e+00> : vector<8xf32>
    %24 = vector.multi_reduction <add>, %23, %cst_17 [1] : vector<8x128xf32> to vector<8xf32>
    %25 = vector.shape_cast %24 : vector<8xf32> to vector<8x1xf32>
    %26 = tpu.reciprocal %25 {approx = true} : vector<8x1xf32> -> vector<8x1xf32>
    %27 = vector.broadcast %26 : vector<8x1xf32> to vector<8x128xf32>
    %28 = arith.mulf %23, %27 : vector<8x128xf32>
    %c0_18 = arith.constant 0 : index
    %c0_19 = arith.constant 0 : index
    %c0_20 = arith.constant 0 : index
    %29 = vector.load %arg8[%c0_18, %c0_19, %c0_20] : memref<2x8x128xf32, #tpu.memory_space<vmem>>, vector<1x8x128xf32>
    %30 = vector.shape_cast %29 : vector<1x8x128xf32> to vector<8x128xf32>
    %31 = vector.shape_cast %28 : vector<8x128xf32> to vector<1x8x128xf32>
    tpu.vector_store %arg8[%c0_18, %c0_19, %c0_20], %31 {strides = array<i32>} : memref<2x8x128xf32, #tpu.memory_space<vmem>>, vector<1x8x128xf32>,
    %c1 = arith.constant 1 : index
    %c0_21 = arith.constant 0 : index
    %c0_22 = arith.constant 0 : index
    %32 = vector.load %arg1[%c1, %c0_21, %c0_22] : memref<2x128x32xf32, #tpu.memory_space<vmem>>, vector<1x128x32xf32>
    %33 = vector.shape_cast %32 : vector<1x128x32xf32> to vector<128x32xf32>
    %cst_23 = arith.constant dense<0.000000e+00> : vector<8x128xf32>
    %34 = tpu.matmul %7, %33, %cst_23 {dimension_numbers = #tpu.dot_dimension_numbers<[1], [1], [0], [0], [0, 0, 1, 0], [], []>} : vector<8x32xf32>, vector<128x32xf32>, vector<8x128xf32> -> vector<8x128xf32>
    %35 = vector.broadcast %8 : vector<8x1xf32> to vector<8x128xf32>
    %36 = arith.addf %34, %35 : vector<8x128xf32>
    %cst_24 = arith.constant -1.000000e+30 : f32
    %37 = vector.broadcast %cst_24 : f32 to vector<8x128xf32>
    %38 = arith.select %11, %37, %36 : vector<8x128xi1>, vector<8x128xf32>
    %cst_25 = arith.constant dense<0xFF800000> : vector<8xf32>
    %39 = vector.multi_reduction <maximumf>, %38, %cst_25 [1] : vector<8x128xf32> to vector<8xf32>
    %40 = vector.shape_cast %39 : vector<8xf32> to vector<8x1xf32>
    %41 = vector.broadcast %40 : vector<8x1xf32> to vector<8x128xf32>
    %42 = arith.subf %38, %41 : vector<8x128xf32>
    %43 = math.exp %42 : vector<8x128xf32>
    %cst_26 = arith.constant dense<0.000000e+00> : vector<8xf32>
    %44 = vector.multi_reduction <add>, %43, %cst_26 [1] : vector<8x128xf32> to vector<8xf32>
    %45 = vector.shape_cast %44 : vector<8xf32> to vector<8x1xf32>
    %46 = tpu.reciprocal %45 {approx = true} : vector<8x1xf32> -> vector<8x1xf32>
    %47 = vector.broadcast %46 : vector<8x1xf32> to vector<8x128xf32>
    %48 = arith.mulf %43, %47 : vector<8x128xf32>
    %c1_27 = arith.constant 1 : index
    %c0_28 = arith.constant 0 : index
    %c0_29 = arith.constant 0 : index
    %49 = vector.load %arg8[%c1_27, %c0_28, %c0_29] : memref<2x8x128xf32, #tpu.memory_space<vmem>>, vector<1x8x128xf32>
    %50 = vector.shape_cast %49 : vector<1x8x128xf32> to vector<8x128xf32>
    %51 = vector.shape_cast %48 : vector<8x128xf32> to vector<1x8x128xf32>
    tpu.vector_store %arg8[%c1_27, %c0_28, %c0_29], %51 {strides = array<i32>} : memref<2x8x128xf32, #tpu.memory_space<vmem>>, vector<1x8x128xf32>,
    return
  }
  func.func @transform_0(%arg0: i32) -> (i32, i32, i32) {
    %c0_i32 = arith.constant 0 : i32
    %c0_i32_0 = arith.constant 0 : i32
    %c0_i32_1 = arith.constant 0 : i32
    return %arg0, %c0_i32, %c0_i32_0 : i32, i32, i32
  }
  func.func @transform_1(%arg0: i32) -> (i32, i32) {
    %c0_i32 = arith.constant 0 : i32
    %c0_i32_0 = arith.constant 0 : i32
    return %arg0, %c0_i32 : i32, i32
  }
  func.func @transform_2(%arg0: i32) -> (i32, i32) {
    %c0_i32 = arith.constant 0 : i32
    %c0_i32_0 = arith.constant 0 : i32
    %c0_i32_1 = arith.constant 0 : i32
    return %c0_i32, %c0_i32_0 : i32, i32
  }
  func.func @transform_3(%arg0: i32) -> (i32, i32) {
    %c0_i32 = arith.constant 0 : i32
    %c0_i32_0 = arith.constant 0 : i32
    %c0_i32_1 = arith.constant 0 : i32
    return %c0_i32, %c0_i32_0 : i32, i32
  }
  func.func @transform_4(%arg0: i32) -> (i32, i32) {
    %c0_i32 = arith.constant 0 : i32
    %c0_i32_0 = arith.constant 0 : i32
    %c0_i32_1 = arith.constant 0 : i32
    return %c0_i32, %c0_i32_0 : i32, i32
  }
  func.func @transform_5(%arg0: i32) -> (i32, i32) {
    %c0_i32 = arith.constant 0 : i32
    %c0_i32_0 = arith.constant 0 : i32
    %c0_i32_1 = arith.constant 0 : i32
    return %c0_i32, %c0_i32_0 : i32, i32
  }
  func.func @transform_6(%arg0: i32) -> (i32, i32) {
    %c0_i32 = arith.constant 0 : i32
    %c0_i32_0 = arith.constant 0 : i32
    return %arg0, %c0_i32 : i32, i32
  }
  func.func @transform_7(%arg0: i32) -> (i32, i32, i32) {
    %c0_i32 = arith.constant 0 : i32
    %c0_i32_0 = arith.constant 0 : i32
    %c0_i32_1 = arith.constant 0 : i32
    return %arg0, %c0_i32, %c0_i32_0 : i32, i32, i32
  }
}

</mosaic_0001>

<llo_original>
// kernel: tpu_custom_call.1
$region0: #{tpu_custom_call.1}
  #allocation0 [shape = 'u32[]', space=smem, size = 0x4, offset = 0x4, fixed_abs, tag = 'smem constant byte address 0x4 - core index']
  #allocation1 [shape = 'u32[144,128]{1,0:T(1,128)}', space=vmem, size = 0x12000, scoped, tag = 'internal scratch']
  %s0 = inlined_call_operand.vmem [shape: f32[2,128,32], index: 0, kind: input, shape index: {}]
  %s1 = inlined_call_operand.vmem [shape: f32[2,32], index: 1, kind: input, shape index: {}]
  %s2 = inlined_call_operand.vmem [shape: f32[8,32], index: 2, kind: input, shape index: {}]
  %s3 = inlined_call_operand.vmem [shape: f32[8,1], index: 3, kind: input, shape index: {}]
  %s4 = inlined_call_operand.vmem [shape: f32[32,128], index: 4, kind: input, shape index: {}]
  %s5 = inlined_call_operand.vmem [shape: f32[1,128], index: 5, kind: input, shape index: {}]
  %s6 = inlined_call_operand.hbm [shape: f32[2,128], index: 6, kind: output, shape index: {0}]
  %s7 = inlined_call_operand.hbm [shape: f32[2,8,128], index: 7, kind: output, shape index: {1}]
  %8 = xla_tuple %s6, %s7
  %s9 = sld [smem:[#allocation0]]
  $region42: #{tpu_custom_call.1} parent=0
    _
  %s11 = ssub.s32 1, %s9
  %s12 = scalar_select 0, %s11, %s9
  $region1: #{tpu_custom_call.1} parent=0
    #allocation2 [shape = 'u8[1024]{0}', space=vmem, size = 0x400, scoped, tag = 'output window, operand 0, single buffered']
    #allocation3 [shape = 's32[1]{0}', space=sflag, size = 0x4, scoped, tag = 'scoped memory for tpu_custom_call.1']
    #allocation4 [shape = 'u8[8192]{0}', space=vmem, size = 0x2000, scoped, tag = 'output window, operand 1, single buffered']
    #allocation5 [shape = 's32[1]{0}', space=sflag, size = 0x4, scoped, tag = 'scoped memory for tpu_custom_call.1']
    %13 = vsyncpa [#allocation3], 0
    %14 = vsyncpa [#allocation5], 0
    // Predicated region
    $region2: #{tpu_custom_call.1} parent=1 // pred_check
      _
    $region3: #{tpu_custom_call.1} parent=1 // pred_check_branch
      %16 = sbr.rel (0) target = $region5
    $region4: #{tpu_custom_call.1} parent=1 // pred_region
      _
    $region5: #{tpu_custom_call.1} parent=1 // pred_fallthru
      _
    // Predicated region
    $region6: #{tpu_custom_call.1} parent=1 // pred_check
      _
    $region7: #{tpu_custom_call.1} parent=1 // pred_check_branch
      %18 = sbr.rel (0) target = $region9
    $region8: #{tpu_custom_call.1} parent=1 // pred_region
      _
    $region9: #{tpu_custom_call.1} parent=1 // pred_fallthru
      _
    // Predicated region
    $region10: #{tpu_custom_call.1} parent=1 // pred_check
      _
    $region11: #{tpu_custom_call.1} parent=1 // pred_check_branch
      %20 = sbr.rel (0) target = $region13
    $region12: #{tpu_custom_call.1} parent=1 // pred_region
      _
    $region13: #{tpu_custom_call.1} parent=1 // pred_fallthru
      _
    // Predicated region
    $region14: #{tpu_custom_call.1} parent=1 // pred_check
      _
    $region15: #{tpu_custom_call.1} parent=1 // pred_check_branch
      %22 = sbr.rel (0) target = $region17
    $region16: #{tpu_custom_call.1} parent=1 // pred_region
      _
    $region17: #{tpu_custom_call.1} parent=1 // pred_fallthru
      _
    // Predicated region
    $region18: #{tpu_custom_call.1} parent=1 // pred_check
      _
    $region19: #{tpu_custom_call.1} parent=1 // pred_check_branch
      %24 = sbr.rel (0) target = $region21
    $region20: #{tpu_custom_call.1} parent=1 // pred_region
      _
    $region21: #{tpu_custom_call.1} parent=1 // pred_fallthru
      _
    // Predicated region
    $region22: #{tpu_custom_call.1} parent=1 // pred_check
      _
    $region23: #{tpu_custom_call.1} parent=1 // pred_check_branch
      %26 = sbr.rel (0) target = $region25
    $region24: #{tpu_custom_call.1} parent=1 // pred_region
      _
    $region25: #{tpu_custom_call.1} parent=1 // pred_fallthru
      _
    %v27 = vld [vmem:[%s1] sm:$0x3]
    %v28 = vld [vmem:[%s4] sm:$0xff]
    %v29 = vld [vmem:[%s4 + $0x8] sm:$0xff]
    %v30 = vld [vmem:[%s4 + $0x10] sm:$0xff]
    %v31 = vld [vmem:[%s4 + $0x18] sm:$0xff]
    %v32 = vld [vmem:[%s5] sm:$0x1]
    %v34 = vlaneseq
    %v35 = vshrl.u32 %v34, 7
    %v36 = vsub.s32 0, %v35
    %v37 = vrot.slane %v32, %v36
    %vm39 = vcmask 261120
    %v41 = vsel %vm39, %v27, 0
    %43 = vmatprep.subr.mxu0 0.0
    %44 = vmatpush1.msra.mxu0 %v28
    %45 = vmatprep.subr.mxu0 0.0
    %46 = vmatpush1.msra.mxu0 %v29
    %47 = vmatprep.subr.mxu0 0.0
    %48 = vmatpush1.msra.mxu0 %v30
    %49 = vmatprep.subr.mxu0 0.0
    %50 = vmatpush1.msra.mxu0 %v31
    %51 = vmatprep.subr.mxu0 0.0
    %52 = vmatpush1.msra.mxu0 0.0
    %53 = vmatprep.subr.mxu0 0.0
    %54 = vmatpush1.msra.mxu0 0.0
    %55 = vmatprep.subr.mxu0 0.0
    %56 = vmatpush1.msra.mxu0 0.0
    %57 = vmatprep.subr.mxu0 0.0
    %58 = vmatpush1.msra.mxu0 0.0
    %59 = vmatprep.subr.mxu0 0.0
    %60 = vmatpush1.msra.mxu0 0.0
    %61 = vmatprep.subr.mxu0 0.0
    %62 = vmatpush1.msra.mxu0 0.0
    %63 = vmatprep.subr.mxu0 0.0
    %64 = vmatpush1.msra.mxu0 0.0
    %65 = vmatprep.subr.mxu0 0.0
    %66 = vmatpush1.msra.mxu0 0.0
    %67 = vmatprep.subr.mxu0 0.0
    %68 = vmatpush1.msra.mxu0 0.0
    %69 = vmatprep.subr.mxu0 0.0
    %70 = vmatpush1.msra.mxu0 0.0
    %71 = vmatprep.subr.mxu0 0.0
    %72 = vmatpush1.msra.mxu0 0.0
    %73 = vmatprep.subr.mxu0 0.0
    %74 = vmatpush1.msra.mxu0 0.0
    %75 = vmatprep.subr.mxu0 0.0
    %76 = vmatpush1.msra.mxu0 0.0
    %77 = vmatprep.subr.mxu0 0.0
    %78 = vmatpush1.msra.mxu0 0.0
    %79 = vmatprep.subr.mxu0 0.0
    %80 = vmatpush1.msra.mxu0 0.0
    %81 = vmatprep.subr.mxu0 0.0
    %82 = vmatpush1.msra.mxu0 0.0
    %83 = vmatprep.subr.mxu0 0.0
    %84 = vmatpush1.msra.mxu0 0.0
    %85 = vmatprep.subr.mxu0 0.0
    %86 = vmatpush1.msra.mxu0 0.0
    %87 = vmatprep.subr.mxu0 0.0
    %88 = vmatpush1.msra.mxu0 0.0
    %89 = vmatprep.subr.mxu0 0.0
    %90 = vmatpush1.msra.mxu0 0.0
    %91 = vmatprep.subr.mxu0 0.0
    %92 = vmatpush1.msra.mxu0 0.0
    %93 = vmatprep.subr.mxu0 0.0
    %94 = vmatpush1.msra.mxu0 0.0
    %95 = vmatprep.subr.mxu0 0.0
    %96 = vmatpush1.msra.mxu0 0.0
    %97 = vmatprep.subr.mxu0 0.0
    %98 = vmatpush1.msra.mxu0 0.0
    %99 = vmatprep.subr.mxu0 0.0
    %100 = vmatpush1.msra.mxu0 0.0
    %101 = vmatprep.subr.mxu0 0.0
    %102 = vmatpush1.msra.mxu0 0.0
    %103 = vmatprep.subr.mxu0 0.0
    %104 = vmatpush1.msra.mxu0 0.0
    %105 = vmatprep.subr.mxu0 0.0
    %106 = vmatpush1.msra.mxu0 0.0
    %107 = vmatprep.mubr.f32.mxu0 0.0
    %108 = vmatmul.mubr.f32.gmra.mrb[0].mxu0 %v41
    %v109 = vpop.f32.mrb[0].mxu0
    %v110 = vadd.f32 %v37, %v109
    %v111 = vpop.f32.mrb[0].mxu0
    %112 = vdwg.mxu0
    %113 = vst [vmem:[#allocation2] sm:$0x3] %v110
    %v114 = vld [vmem:[%s2] sm:$0xff]
    %v115 = vld [vmem:[%s3] sm:$0xff]
    %v116 = vlaneseq
    %v117 = vand.u32 %v116, 127
    %vm118 = vcmp.ge.s32.totalorder %v117, 8
    %v119 = vld [vmem:[%s0] sm:$0xff]
    %v120 = vld [vmem:[%s0 + $0x8] sm:$0xff]
    %v121 = vld [vmem:[%s0 + $0x10] sm:$0xff]
    %v122 = vld [vmem:[%s0 + $0x18] sm:$0xff]
    %v123 = vld [vmem:[%s0 + $0x20] sm:$0xff]
    %v124 = vld [vmem:[%s0 + $0x28] sm:$0xff]
    %v125 = vld [vmem:[%s0 + $0x30] sm:$0xff]
    %v126 = vld [vmem:[%s0 + $0x38] sm:$0xff]
    %v127 = vld [vmem:[%s0 + $0x40] sm:$0xff]
    %v128 = vld [vmem:[%s0 + $0x48] sm:$0xff]
    %v129 = vld [vmem:[%s0 + $0x50] sm:$0xff]
    %v130 = vld [vmem:[%s0 + $0x58] sm:$0xff]
    %v131 = vld [vmem:[%s0 + $0x60] sm:$0xff]
    %v132 = vld [vmem:[%s0 + $0x68] sm:$0xff]
    %v133 = vld [vmem:[%s0 + $0x70] sm:$0xff]
    %v134 = vld [vmem:[%s0 + $0x78] sm:$0xff]
    %136 = vset.pattern.permute.xlu0 0
    %137 = vperm.xlu0 %136, %v115
    %v138 = vpop.permute.xlu0 %137
    %v141 = vsel %vm39, %v114, 0
    %v144 = vsel %vm39, %v119, 0
    %v147 = vsel %vm39, %v120, 0
    %v150 = vsel %vm39, %v121, 0
    %v153 = vsel %vm39, %v122, 0
    %v156 = vsel %vm39, %v123, 0
    %v159 = vsel %vm39, %v124, 0
    %v162 = vsel %vm39, %v125, 0
    %v165 = vsel %vm39, %v126, 0
    %v168 = vsel %vm39, %v127, 0
    %v171 = vsel %vm39, %v128, 0
    %v174 = vsel %vm39, %v129, 0
    %v177 = vsel %vm39, %v130, 0
    %v180 = vsel %vm39, %v131, 0
    %v183 = vsel %vm39, %v132, 0
    %v186 = vsel %vm39, %v133, 0
    %v189 = vsel %vm39, %v134, 0
    %191 = vmatprep.subr.mxu0 0.0
    %192 = vmatpush1.xpose.msra.mxu0 %v144
    %193 = vmatprep.subr.mxu0 0.0
    %194 = vmatpush1.xpose.msra.mxu0 %v147
    %195 = vmatprep.subr.mxu0 0.0
    %196 = vmatpush1.xpose.msra.mxu0 %v150
    %197 = vmatprep.subr.mxu0 0.0
    %198 = vmatpush1.xpose.msra.mxu0 %v153
    %199 = vmatprep.subr.mxu0 0.0
    %200 = vmatpush1.xpose.msra.mxu0 %v156
    %201 = vmatprep.subr.mxu0 0.0
    %202 = vmatpush1.xpose.msra.mxu0 %v159
    %203 = vmatprep.subr.mxu0 0.0
    %204 = vmatpush1.xpose.msra.mxu0 %v162
    %205 = vmatprep.subr.mxu0 0.0
    %206 = vmatpush1.xpose.msra.mxu0 %v165
    %207 = vmatprep.subr.mxu0 0.0
    %208 = vmatpush1.xpose.msra.mxu0 %v168
    %209 = vmatprep.subr.mxu0 0.0
    %210 = vmatpush1.xpose.msra.mxu0 %v171
    %211 = vmatprep.subr.mxu0 0.0
    %212 = vmatpush1.xpose.msra.mxu0 %v174
    %213 = vmatprep.subr.mxu0 0.0
    %214 = vmatpush1.xpose.msra.mxu0 %v177
    %215 = vmatprep.subr.mxu0 0.0
    %216 = vmatpush1.xpose.msra.mxu0 %v180
    %217 = vmatprep.subr.mxu0 0.0
    %218 = vmatpush1.xpose.msra.mxu0 %v183
    %219 = vmatprep.subr.mxu0 0.0
    %220 = vmatpush1.xpose.msra.mxu0 %v186
    %221 = vmatprep.subr.mxu0 0.0
    %222 = vmatpush1.xpose.msra.mxu0 %v189
    %223 = vmatprep.subr.mxu0 0.0
    %224 = vmatpush1.xpose.msra.mxu0 0.0
    %225 = vmatprep.subr.mxu0 0.0
    %226 = vmatpush1.xpose.msra.mxu0 0.0
    %227 = vmatprep.subr.mxu0 0.0
    %228 = vmatpush1.xpose.msra.mxu0 0.0
    %229 = vmatprep.subr.mxu0 0.0
    %230 = vmatpush1.xpose.msra.mxu0 0.0
    %231 = vmatprep.subr.mxu0 0.0
    %232 = vmatpush1.xpose.msra.mxu0 0.0
    %233 = vmatprep.subr.mxu0 0.0
    %234 = vmatpush1.xpose.msra.mxu0 0.0
    %235 = vmatprep.subr.mxu0 0.0
    %236 = vmatpush1.xpose.msra.mxu0 0.0
    %237 = vmatprep.subr.mxu0 0.0
    %238 = vmatpush1.xpose.msra.mxu0 0.0
    %239 = vmatprep.subr.mxu0 0.0
    %240 = vmatpush1.xpose.msra.mxu0 0.0
    %241 = vmatprep.subr.mxu0 0.0
    %242 = vmatpush1.xpose.msra.mxu0 0.0
    %243 = vmatprep.subr.mxu0 0.0
    %244 = vmatpush1.xpose.msra.mxu0 0.0
    %245 = vmatprep.subr.mxu0 0.0
    %246 = vmatpush1.xpose.msra.mxu0 0.0
    %247 = vmatprep.subr.mxu0 0.0
    %248 = vmatpush1.xpose.msra.mxu0 0.0
    %249 = vmatprep.subr.mxu0 0.0
    %250 = vmatpush1.xpose.msra.mxu0 0.0
    %251 = vmatprep.subr.mxu0 0.0
    %252 = vmatpush1.xpose.msra.mxu0 0.0
    %253 = vmatprep.subr.mxu0 0.0
    %254 = vmatpush1.xpose.msra.mxu0 0.0
    %255 = vmatprep.mubr.f32.mxu0 0.0
    %256 = vmatmul.mubr.f32.gmra.mrb[0].mxu0 %v141
    %v257 = vpop.f32.mrb[0].mxu0
    %v258 = vadd.f32 %v138, %v257
    %v259 = vpop.f32.mrb[0].mxu0
    %260 = vdwg.mxu0
    %v261 = vsel %vm118, -1e+30, %v258
    %262 = vmax.xlane.f32.xlu0 %v261
    %v263 = vpop.xlane.xlu0 %262
    %v264 = vsub.f32 %v261, %v263
    %v265 = vmul.f32 %v264, 1.442695
    %v266 = vpow.pop %v265
    %267 = vadd.xlane.f32.xlu0 %v266
    %v268 = vpop.xlane.xlu0 %267
    %v269 = vrcp.pop %v268
    %v270 = vmul.f32 %v266, %v269
    %271 = vst [vmem:[#allocation4] sm:$0xff] %v270
    %s272 = scalar_lea.vmem %s0, 128
    %v273 = vld [vmem:[%s272] sm:$0xff]
    %v274 = vld [vmem:[%s272 + $0x8] sm:$0xff]
    %v275 = vld [vmem:[%s272 + $0x10] sm:$0xff]
    %v276 = vld [vmem:[%s272 + $0x18] sm:$0xff]
    %v277 = vld [vmem:[%s272 + $0x20] sm:$0xff]
    %v278 = vld [vmem:[%s272 + $0x28] sm:$0xff]
    %v279 = vld [vmem:[%s272 + $0x30] sm:$0xff]
    %v280 = vld [vmem:[%s272 + $0x38] sm:$0xff]
    %v281 = vld [vmem:[%s272 + $0x40] sm:$0xff]
    %v282 = vld [vmem:[%s272 + $0x48] sm:$0xff]
    %v283 = vld [vmem:[%s272 + $0x50] sm:$0xff]
    %v284 = vld [vmem:[%s272 + $0x58] sm:$0xff]
    %v285 = vld [vmem:[%s272 + $0x60] sm:$0xff]
    %v286 = vld [vmem:[%s272 + $0x68] sm:$0xff]
    %v287 = vld [vmem:[%s272 + $0x70] sm:$0xff]
    %v288 = vld [vmem:[%s272 + $0x78] sm:$0xff]
    %v290 = vsel %vm39, %v273, 0
    %v293 = vsel %vm39, %v274, 0
    %v296 = vsel %vm39, %v275, 0
    %v299 = vsel %vm39, %v276, 0
    %v302 = vsel %vm39, %v277, 0
    %v305 = vsel %vm39, %v278, 0
    %v308 = vsel %vm39, %v279, 0
    %v311 = vsel %vm39, %v280, 0
    %v314 = vsel %vm39, %v281, 0
    %v317 = vsel %vm39, %v282, 0
    %v320 = vsel %vm39, %v283, 0
    %v323 = vsel %vm39, %v284, 0
    %v326 = vsel %vm39, %v285, 0
    %v329 = vsel %vm39, %v286, 0
    %v332 = vsel %vm39, %v287, 0
    %v335 = vsel %vm39, %v288, 0
    %337 = vmatprep.subr.mxu0 0.0
    %338 = vmatpush1.xpose.msra.mxu0 %v290
    %339 = vmatprep.subr.mxu0 0.0
    %340 = vmatpush1.xpose.msra.mxu0 %v293
    %341 = vmatprep.subr.mxu0 0.0
    %342 = vmatpush1.xpose.msra.mxu0 %v296
    %343 = vmatprep.subr.mxu0 0.0
    %344 = vmatpush1.xpose.msra.mxu0 %v299
    %345 = vmatprep.subr.mxu0 0.0
    %346 = vmatpush1.xpose.msra.mxu0 %v302
    %347 = vmatprep.subr.mxu0 0.0
    %348 = vmatpush1.xpose.msra.mxu0 %v305
    %349 = vmatprep.subr.mxu0 0.0
    %350 = vmatpush1.xpose.msra.mxu0 %v308
    %351 = vmatprep.subr.mxu0 0.0
    %352 = vmatpush1.xpose.msra.mxu0 %v311
    %353 = vmatprep.subr.mxu0 0.0
    %354 = vmatpush1.xpose.msra.mxu0 %v314
    %355 = vmatprep.subr.mxu0 0.0
    %356 = vmatpush1.xpose.msra.mxu0 %v317
    %357 = vmatprep.subr.mxu0 0.0
    %358 = vmatpush1.xpose.msra.mxu0 %v320
    %359 = vmatprep.subr.mxu0 0.0
    %360 = vmatpush1.xpose.msra.mxu0 %v323
    %361 = vmatprep.subr.mxu0 0.0
    %362 = vmatpush1.xpose.msra.mxu0 %v326
    %363 = vmatprep.subr.mxu0 0.0
    %364 = vmatpush1.xpose.msra.mxu0 %v329
    %365 = vmatprep.subr.mxu0 0.0
    %366 = vmatpush1.xpose.msra.mxu0 %v332
    %367 = vmatprep.subr.mxu0 0.0
    %368 = vmatpush1.xpose.msra.mxu0 %v335
    %369 = vmatprep.subr.mxu0 0.0
    %370 = vmatpush1.xpose.msra.mxu0 0.0
    %371 = vmatprep.subr.mxu0 0.0
    %372 = vmatpush1.xpose.msra.mxu0 0.0
    %373 = vmatprep.subr.mxu0 0.0
    %374 = vmatpush1.xpose.msra.mxu0 0.0
    %375 = vmatprep.subr.mxu0 0.0
    %376 = vmatpush1.xpose.msra.mxu0 0.0
    %377 = vmatprep.subr.mxu0 0.0
    %378 = vmatpush1.xpose.msra.mxu0 0.0
    %379 = vmatprep.subr.mxu0 0.0
    %380 = vmatpush1.xpose.msra.mxu0 0.0
    %381 = vmatprep.subr.mxu0 0.0
    %382 = vmatpush1.xpose.msra.mxu0 0.0
    %383 = vmatprep.subr.mxu0 0.0
    %384 = vmatpush1.xpose.msra.mxu0 0.0
    %385 = vmatprep.subr.mxu0 0.0
    %386 = vmatpush1.xpose.msra.mxu0 0.0
    %387 = vmatprep.subr.mxu0 0.0
    %388 = vmatpush1.xpose.msra.mxu0 0.0
    %389 = vmatprep.subr.mxu0 0.0
    %390 = vmatpush1.xpose.msra.mxu0 0.0
    %391 = vmatprep.subr.mxu0 0.0
    %392 = vmatpush1.xpose.msra.mxu0 0.0
    %393 = vmatprep.subr.mxu0 0.0
    %394 = vmatpush1.xpose.msra.mxu0 0.0
    %395 = vmatprep.subr.mxu0 0.0
    %396 = vmatpush1.xpose.msra.mxu0 0.0
    %397 = vmatprep.subr.mxu0 0.0
    %398 = vmatpush1.xpose.msra.mxu0 0.0
    %399 = vmatprep.subr.mxu0 0.0
    %400 = vmatpush1.xpose.msra.mxu0 0.0
    %401 = vmatprep.mubr.f32.mxu0 0.0
    %402 = vmatmul.mubr.f32.gmra.mrb[0].mxu0 %v141
    %v403 = vpop.f32.mrb[0].mxu0
    %v404 = vadd.f32 %v138, %v403
    %v405 = vpop.f32.mrb[0].mxu0
    %406 = vdwg.mxu0
    %v407 = vsel %vm118, -1e+30, %v404
    %408 = vmax.xlane.f32.xlu0 %v407
    %v409 = vpop.xlane.xlu0 %408
    %v410 = vsub.f32 %v407, %v409
    %v411 = vmul.f32 %v410, 1.442695
    %v412 = vpow.pop %v411
    %413 = vadd.xlane.f32.xlu0 %v412
    %v414 = vpop.xlane.xlu0 %413
    %v415 = vrcp.pop %v414
    %v416 = vmul.f32 %v412, %v415
    %s417 = scalar_lea.vmem [#allocation4], 8
    %418 = vst [vmem:[%s417] sm:$0xff] %v416
    // Predicated region
    $region26: #{tpu_custom_call.1} parent=1 // pred_check
      _
    $region27: #{tpu_custom_call.1} parent=1 // pred_check_branch
      %420 = sbr.rel (0) target = $region29
    $region28: #{tpu_custom_call.1} parent=1 // pred_region
      %s422 = ssub.s32 32, 32
      %423 = vsyncadd [#allocation3], %s422
      %s425 = sshll.u32 [#allocation2], 4
      %s426 = int_to_ptr.vmem [resolvable:$true] %s425
      %428 = dma.vmem_to_hbm [thread:$0]  %s426, 32, %s6, [#allocation3]
    $region29: #{tpu_custom_call.1} parent=1 // pred_fallthru
      _
    // Predicated region
    $region30: #{tpu_custom_call.1} parent=1 // pred_check
      _
    $region31: #{tpu_custom_call.1} parent=1 // pred_check_branch
      %430 = sbr.rel (0) target = $region33
    $region32: #{tpu_custom_call.1} parent=1 // pred_region
      %s432 = ssub.s32 256, 256
      %433 = vsyncadd [#allocation5], %s432
      %s434 = sshll.u32 [#allocation4], 4
      %s435 = int_to_ptr.vmem [resolvable:$true] %s434
      %440 = dma.vmem_to_hbm [thread:$0]  %s435, 256, %s7, [#allocation5], 128, 128, 8
    $region33: #{tpu_custom_call.1} parent=1 // pred_fallthru
      _
    // Predicated region
    $region34: #{tpu_custom_call.1} parent=1 // pred_check
      _
    $region35: #{tpu_custom_call.1} parent=1 // pred_check_branch
      %442 = sbr.rel (0) target = $region37
    $region36: #{tpu_custom_call.1} parent=1 // pred_region
      %443 = dma.done [#allocation3], 32
    $region37: #{tpu_custom_call.1} parent=1 // pred_fallthru
      _
    // Predicated region
    $region38: #{tpu_custom_call.1} parent=1 // pred_check
      _
    $region39: #{tpu_custom_call.1} parent=1 // pred_check_branch
      %445 = sbr.rel (0) target = $region41
    $region40: #{tpu_custom_call.1} parent=1 // pred_region
      %446 = dma.done [#allocation5], 256
    $region41: #{tpu_custom_call.1} parent=1 // pred_fallthru
      _
    %447 = vsyncpa [#allocation3], 1
    %448 = vsyncpa [#allocation5], 1

</llo_original>
